<compile_context>
chip_gen: v7x
topology: tpu7x:2x2x1
jax: 0.10.0
libtpu: 0.0.40
codegen_flags: <defaults>
</compile_context>

<pallas_src>
import jax
import jax.numpy as jnp
from jax.experimental import pallas as pl
from jax.experimental.pallas import tpu as pltpu


def _model_kernel(x_ref, wt_ref, b_ref, out_ref):
    # x_ref : (5, 5)  input
    # wt_ref: (5, 5)  W^T (already transposed in the wrapper)
    # b_ref : (1, 5)  bias
    x = x_ref[...]
    wt = wt_ref[...]
    b = b_ref[...]

    # y = x @ W^T + b  (standard (1,0) contraction, no in-kernel transpose)
    y = jnp.dot(x, wt, preferred_element_type=jnp.float32) + b

    # Global max of the logical (5,5) result; padding never enters (the refs
    # carry the exact logical shapes).
    m = jnp.max(y)
    out_ref[...] = jnp.full(out_ref.shape, m, dtype=out_ref.dtype)


@jax.jit
def model_forward(x, w, b):
    """x: (5,5) f32, w: (5,5) torch layout (out,in), b: (5,) -> (3,) f32."""
    x32 = x.astype(jnp.float32)
    wt = w.astype(jnp.float32).T          # (in, out): transpose fused in wrapper
    b2 = b.astype(jnp.float32).reshape(1, 5)

    out = pl.pallas_call(
        _model_kernel,
        out_shape=jax.ShapeDtypeStruct((1, 1), jnp.float32),
        in_specs=[
            pl.BlockSpec(memory_space=pltpu.MemorySpace.VMEM),
            pl.BlockSpec(memory_space=pltpu.MemorySpace.VMEM),
            pl.BlockSpec(memory_space=pltpu.MemorySpace.VMEM),
        ],
        out_specs=pl.BlockSpec(memory_space=pltpu.MemorySpace.VMEM),
        cost_estimate=pl.CostEstimate(
            flops=250, transcendentals=0, bytes_accessed=600
        ),
    )(x32, wt, b2)

    # Trivial broadcast of the scalar to the module's (3,) output shape.
    return jnp.broadcast_to(out[0, 0], (3,))


def _reference(x, w, b):
    y = x @ w.T + b
    flat3 = jnp.concatenate([y.reshape(-1)] * 3)      # stack + transpose + flatten
    flat9 = jnp.concatenate([flat3] * 3)              # cat
    stacked = jnp.stack([flat9] * 3, axis=1)          # (225, 3)
    return jnp.max(stacked, axis=0)                   # (3,)


if __name__ == "__main__":
    key = jax.random.PRNGKey(0)
    kx, kw, kb = jax.random.split(key, 3)

    x = jax.random.normal(kx, (5, 5), dtype=jnp.float32)
    # Deterministic Linear(5, 5) params (torch layout: weight (out, in), bias (out,)).
    w = jax.random.normal(kw, (5, 5), dtype=jnp.float32) * 0.2
    b = jax.random.normal(kb, (5,), dtype=jnp.float32) * 0.1

    out = model_forward(x, w, b)
    jax.block_until_ready(out)

    ref = _reference(x, w, b)
    assert out.shape == (3,)
    assert jnp.allclose(out, ref, atol=1e-5, rtol=1e-5)
    print("KERNEL_OK")
</pallas_src>

<mosaic_0001>
module attributes {stable_mosaic.version = 11 : i64} {
  func.func @_model_kernel(%arg0: memref<5x5xf32, #tpu.memory_space<vmem>>, %arg1: memref<5x5xf32, #tpu.memory_space<vmem>>, %arg2: memref<1x5xf32, #tpu.memory_space<vmem>>, %arg3: memref<1x1xf32, #tpu.memory_space<vmem>>) attributes {dimension_semantics = [], scalar_prefetch = 0 : i64, scratch_operands = 0 : i64, tpu.core_type = #tpu.core_type<tc>} {
    %c0 = arith.constant 0 : index
    %c0_0 = arith.constant 0 : index
    %0 = vector.load %arg0[%c0, %c0_0] : memref<5x5xf32, #tpu.memory_space<vmem>>, vector<5x5xf32>
    %c0_1 = arith.constant 0 : index
    %c0_2 = arith.constant 0 : index
    %1 = vector.load %arg1[%c0_1, %c0_2] : memref<5x5xf32, #tpu.memory_space<vmem>>, vector<5x5xf32>
    %c0_3 = arith.constant 0 : index
    %c0_4 = arith.constant 0 : index
    %2 = vector.load %arg2[%c0_3, %c0_4] : memref<1x5xf32, #tpu.memory_space<vmem>>, vector<1x5xf32>
    %cst = arith.constant dense<0.000000e+00> : vector<5x5xf32>
    %3 = tpu.matmul %0, %1, %cst {dimension_numbers = #tpu.dot_dimension_numbers<[1], [0], [0], [1], [0, 0, 1, 1], [], []>} : vector<5x5xf32>, vector<5x5xf32>, vector<5x5xf32> -> vector<5x5xf32>
    %4 = vector.broadcast %2 : vector<1x5xf32> to vector<5x5xf32>
    %5 = arith.addf %3, %4 : vector<5x5xf32>
    %6 = vector.shape_cast %5 : vector<5x5xf32> to vector<1x5x5xf32>
    %cst_5 = arith.constant dense<0xFF800000> : vector<1xf32>
    %7 = vector.multi_reduction <maximumf>, %6, %cst_5 [1, 2] : vector<1x5x5xf32> to vector<1xf32>
    %8 = vector.shape_cast %7 : vector<1xf32> to vector<1x1x1xf32>
    %9 = vector.extract %8[0, 0, 0] : f32 from vector<1x1x1xf32>
    %10 = vector.broadcast %9 : f32 to vector<1x1xf32>
    %c0_6 = arith.constant 0 : index
    %c0_7 = arith.constant 0 : index
    %11 = vector.load %arg3[%c0_6, %c0_7] : memref<1x1xf32, #tpu.memory_space<vmem>>, vector<1x1xf32>
    tpu.vector_store %arg3[%c0_6, %c0_7], %10 {strides = array<i32>} : memref<1x1xf32, #tpu.memory_space<vmem>>, vector<1x1xf32>,
    return
  }
}

</mosaic_0001>

<llo_original>
// kernel: model_forward.1
$region0: #{model_forward.1}
  #allocation0 [shape = 'u32[]', space=smem, size = 0x4, offset = 0x4, fixed_abs, tag = 'smem constant byte address 0x4 - core index']
  #allocation1 [shape = 'u32[144,128]{1,0:T(1,128)}', space=vmem, size = 0x12000, scoped, tag = 'internal scratch']
  %s0 = inlined_call_operand.vmem [shape: f32[5,5], index: 0, kind: input, shape index: {}]
  %s1 = inlined_call_operand.vmem [shape: f32[5,5], index: 1, kind: input, shape index: {}]
  %s2 = inlined_call_operand.vmem [shape: f32[1,5], index: 2, kind: input, shape index: {}]
  %s3 = inlined_call_operand.hbm [shape: f32[1,1], index: 3, kind: output, shape index: {}]
  %s4 = sld [smem:[#allocation0]]
  $region22: #{model_forward.1} parent=0
    _
  %s6 = ssub.s32 1, %s4
  %s7 = scalar_select 0, %s6, %s4
  $region1: #{model_forward.1} parent=0
    #allocation2 [shape = 'u8[512]{0}', space=vmem, size = 0x400, scoped, tag = 'output window, operand 0, single buffered']
    #allocation3 [shape = 's32[1]{0}', space=sflag, size = 0x4, scoped, tag = 'scoped memory for model_forward.1']
    %8 = vsyncpa [#allocation3], 0
    // Predicated region
    $region2: #{model_forward.1} parent=1 // pred_check
      _
    $region3: #{model_forward.1} parent=1 // pred_check_branch
      %10 = sbr.rel (0) target = $region5
    $region4: #{model_forward.1} parent=1 // pred_region
      _
    $region5: #{model_forward.1} parent=1 // pred_fallthru
      _
    // Predicated region
    $region6: #{model_forward.1} parent=1 // pred_check
      _
    $region7: #{model_forward.1} parent=1 // pred_check_branch
      %12 = sbr.rel (0) target = $region9
    $region8: #{model_forward.1} parent=1 // pred_region
      _
    $region9: #{model_forward.1} parent=1 // pred_fallthru
      _
    // Predicated region
    $region10: #{model_forward.1} parent=1 // pred_check
      _
    $region11: #{model_forward.1} parent=1 // pred_check_branch
      %14 = sbr.rel (0) target = $region13
    $region12: #{model_forward.1} parent=1 // pred_region
      _
    $region13: #{model_forward.1} parent=1 // pred_fallthru
      _
    %v15 = vld [vmem:[%s0] sm:$0x1f]
    %v16 = vld [vmem:[%s1] sm:$0x1f]
    %v17 = vld [vmem:[%s2] sm:$0x1]
    %v19 = vlaneseq
    %v20 = vshrl.u32 %v19, 7
    %v21 = vsub.s32 0, %v20
    %v22 = vrot.slane %v17, %v21
    %vm24 = vcmask 39936
    %v26 = vsel %vm24, %v15, 0
    %vm28 = vcmask 1044480
    %v30 = vsel %vm28, %v16, 0
    %32 = vmatprep.subr.mxu0 0.0
    %33 = vmatpush1.msra.mxu0 %v30
    %34 = vmatprep.subr.mxu0 0.0
    %35 = vmatpush1.msra.mxu0 0.0
    %36 = vmatprep.subr.mxu0 0.0
    %37 = vmatpush1.msra.mxu0 0.0
    %38 = vmatprep.subr.mxu0 0.0
    %39 = vmatpush1.msra.mxu0 0.0
    %40 = vmatprep.subr.mxu0 0.0
    %41 = vmatpush1.msra.mxu0 0.0
    %42 = vmatprep.subr.mxu0 0.0
    %43 = vmatpush1.msra.mxu0 0.0
    %44 = vmatprep.subr.mxu0 0.0
    %45 = vmatpush1.msra.mxu0 0.0
    %46 = vmatprep.subr.mxu0 0.0
    %47 = vmatpush1.msra.mxu0 0.0
    %48 = vmatprep.subr.mxu0 0.0
    %49 = vmatpush1.msra.mxu0 0.0
    %50 = vmatprep.subr.mxu0 0.0
    %51 = vmatpush1.msra.mxu0 0.0
    %52 = vmatprep.subr.mxu0 0.0
    %53 = vmatpush1.msra.mxu0 0.0
    %54 = vmatprep.subr.mxu0 0.0
    %55 = vmatpush1.msra.mxu0 0.0
    %56 = vmatprep.subr.mxu0 0.0
    %57 = vmatpush1.msra.mxu0 0.0
    %58 = vmatprep.subr.mxu0 0.0
    %59 = vmatpush1.msra.mxu0 0.0
    %60 = vmatprep.subr.mxu0 0.0
    %61 = vmatpush1.msra.mxu0 0.0
    %62 = vmatprep.subr.mxu0 0.0
    %63 = vmatpush1.msra.mxu0 0.0
    %64 = vmatprep.subr.mxu0 0.0
    %65 = vmatpush1.msra.mxu0 0.0
    %66 = vmatprep.subr.mxu0 0.0
    %67 = vmatpush1.msra.mxu0 0.0
    %68 = vmatprep.subr.mxu0 0.0
    %69 = vmatpush1.msra.mxu0 0.0
    %70 = vmatprep.subr.mxu0 0.0
    %71 = vmatpush1.msra.mxu0 0.0
    %72 = vmatprep.subr.mxu0 0.0
    %73 = vmatpush1.msra.mxu0 0.0
    %74 = vmatprep.subr.mxu0 0.0
    %75 = vmatpush1.msra.mxu0 0.0
    %76 = vmatprep.subr.mxu0 0.0
    %77 = vmatpush1.msra.mxu0 0.0
    %78 = vmatprep.subr.mxu0 0.0
    %79 = vmatpush1.msra.mxu0 0.0
    %80 = vmatprep.subr.mxu0 0.0
    %81 = vmatpush1.msra.mxu0 0.0
    %82 = vmatprep.subr.mxu0 0.0
    %83 = vmatpush1.msra.mxu0 0.0
    %84 = vmatprep.subr.mxu0 0.0
    %85 = vmatpush1.msra.mxu0 0.0
    %86 = vmatprep.subr.mxu0 0.0
    %87 = vmatpush1.msra.mxu0 0.0
    %88 = vmatprep.subr.mxu0 0.0
    %89 = vmatpush1.msra.mxu0 0.0
    %90 = vmatprep.subr.mxu0 0.0
    %91 = vmatpush1.msra.mxu0 0.0
    %92 = vmatprep.subr.mxu0 0.0
    %93 = vmatpush1.msra.mxu0 0.0
    %94 = vmatprep.subr.mxu0 0.0
    %95 = vmatpush1.msra.mxu0 0.0
    %96 = vmatprep.mubr.f32.mxu0 0.0
    %97 = vmatmul.mubr.f32.gmra.mrb[0].mxu0 %v26
    %v98 = vpop.f32.mrb[0].mxu0
    %v99 = vadd.f32 %v22, %v98
    %v100 = vpop.f32.mrb[0].mxu0
    %101 = vdwg.mxu0
    %vm102 = vcmask 36864
    %v103 = vsel %vm102, %v99, -inf
    %104 = vmax.xlane.f32.xlu0 %v103
    %v105 = vpop.xlane.xlu0 %104
    %v106 = vrot.slane %v105, 4
    %v107 = vmax.f32 %v105, %v106
    %v108 = vrot.slane %v107, 2
    %v109 = vmax.f32 %v107, %v108
    %v110 = vrot.slane %v109, 1
    %v111 = vmax.f32 %v109, %v110
    %s112 = vtos %v111
    %v113 = vstv %s112
    %vm114 = vcmask 0
    %115 = vst.msk [vmem:[#allocation2] sm:$0x1] %vm114, %v113
    // Predicated region
    $region14: #{model_forward.1} parent=1 // pred_check
      _
    $region15: #{model_forward.1} parent=1 // pred_check_branch
      %117 = sbr.rel (0) target = $region17
    $region16: #{model_forward.1} parent=1 // pred_region
      %s119 = ssub.s32 16, 16
      %120 = vsyncadd [#allocation3], %s119
      %s122 = sshll.u32 [#allocation2], 4
      %s123 = int_to_ptr.vmem [resolvable:$true] %s122
      %125 = dma.vmem_to_hbm [thread:$0]  %s123, 16, %s3, [#allocation3]
    $region17: #{model_forward.1} parent=1 // pred_fallthru
      _
    // Predicated region
    $region18: #{model_forward.1} parent=1 // pred_check
      _
    $region19: #{model_forward.1} parent=1 // pred_check_branch
      %127 = sbr.rel (0) target = $region21
    $region20: #{model_forward.1} parent=1 // pred_region
      %128 = dma.done [#allocation3], 16
    $region21: #{model_forward.1} parent=1 // pred_fallthru
      _
    %129 = vsyncpa [#allocation3], 1

</llo_original>
